<compile_context>
chip_gen: v7x
topology: tpu7x:2x2x1
jax: 0.10.0
libtpu: 0.0.40
codegen_flags: <defaults>
</compile_context>

<pallas_src>
import functools
import re

import jax
import jax.numpy as jnp
from jax.experimental import pallas as pl
from jax.experimental.pallas import tpu as pltpu

HIDDEN = 32            # hidden width of the inner 1 -> H -> H -> 1 network
BATCH_TILE = 8192      # batch elements (lanes) per grid step (perf review)
MAX_BATCH_TILE = 16384 # v7x VMEM headroom cap (64 MiB phys / 32 MiB scoped)
LANE = 128


def _round_up(n, m):
    return ((n + m - 1) // m) * m


def preferred_tanh_dtype():
    """bf16 tanh/matmul operands on v6e/v7x (bf16 EUP path); f32 otherwise."""
    try:
        kind = jax.devices()[0].device_kind  # e.g. "TPU v6e", "TPU v5 lite"
        m = re.search(r"v(\d+)", str(kind))
        if m is not None and int(m.group(1)) >= 6:
            return jnp.bfloat16
    except Exception:
        pass
    return jnp.float32


def _subtnn_kernel(x_ref, w1_ref, b1_ref, w2t_ref, b2_ref, w3_ref, b3_ref,
                   o_ref, *, bc_a, bc_b, bf_scale, apply_bc, tanh_dtype):
    """One batch tile.  Batch on lanes, hidden on sublanes.

    x_ref   : (1, TB)   input positions                        (f32)
    w1_ref  : (H, 1)    layer-1 weight (column)                 (f32)
    b1_ref  : (H, 1)                                            (f32)
    w2t_ref : (H, H)    layer-2 weight, pre-transposed          (f32 or bf16)
    b2_ref  : (H, 1)                                            (f32)
    w3_ref  : (1, H)    layer-3 weight (row, for MXU)           (f32 or bf16)
    b3_ref  : (1, 1)    scalar bias in SMEM                     (f32)
    o_ref   : (1, TB)                                           (f32)
    """
    x = x_ref[...]                                            # (1, TB) f32

    # layer 1: outer-product broadcast (H,1)*(1,TB) -> (H, TB) on the VPU.
    z1 = w1_ref[...] * x + b1_ref[...]                        # (H, TB) f32
    h1 = jnp.tanh(z1.astype(tanh_dtype))                      # EUP (bf16 on v6e+)

    # layer 2: (H,H) @ (H,TB) on the MXU, f32 accumulate; operands stay in
    # tanh_dtype (bf16 on v6e/v7x avoids the f32 multi-pass and two casts).
    z2 = jnp.dot(w2t_ref[...], h1,
                 preferred_element_type=jnp.float32) + b2_ref[...]
    h2 = jnp.tanh(z2.astype(tanh_dtype))                      # (H, TB)

    # layer 3: weighted reduction over H on the (>90% idle) MXU:
    # (1,H) @ (H,TB) -> (1, TB), plus the scalar bias from SMEM.
    y = jnp.dot(w3_ref[...], h2,
                preferred_element_type=jnp.float32) + b3_ref[0, 0]

    if apply_bc:
        # homogeneous Dirichlet factor; the divide is pre-folded into bf_scale.
        y = (x - bc_a) * (bc_b - x) * (bf_scale * y)

    o_ref[...] = y


def subtnn_forward(x, params, boundary_condition=None, *,
                   batch_tile=BATCH_TILE, tanh_dtype=jnp.float32,
                   lane_dense_output=False):
    """Pallas implementation of SubTensorNeuralNetwork.forward.

    x: (B, 1) float32.  Returns (B, 1) float32 (or (1, B_pad) if
    lane_dense_output=True).

    tanh_dtype=jnp.bfloat16 enables the fast EUP path on v6e/v7x (looser
    numerics); the f32 default matches the PyTorch module to ~1e-6.

    Note: the module's data-dependent ValueError range check is intentionally
    omitted (it forces a device->host sync and breaks under jax.jit).
    """
    w1, b1, w2, b2, w3, b3 = params
    bsz = x.shape[0]
    assert x.shape == (bsz, 1)
    hidden = w1.shape[1]

    # ---- lane-dense relayout: batch -> lanes -------------------------------
    x_row = x.reshape(1, bsz)                       # order-preserving reshape

    batch_tile = _round_up(int(batch_tile), LANE)
    batch_tile = min(batch_tile, MAX_BATCH_TILE)    # v7x VMEM headroom
    # Keep >= 2 grid steps when possible so both v7x TensorCores get work.
    tb = min(batch_tile, max(LANE, _round_up(pl.cdiv(bsz, 2), LANE)))
    b_pad = _round_up(bsz, tb)
    if b_pad != bsz:
        pad_val = (float(boundary_condition[0])
                   if boundary_condition is not None else 0.0)
        x_row = jnp.pad(x_row, ((0, 0), (0, b_pad - bsz)),
                        constant_values=pad_val)

    # matmul operand dtype: bf16 on the fast path, f32 otherwise.
    mm_dtype = (jnp.float32 if jnp.dtype(tanh_dtype) == jnp.dtype(jnp.float32)
                else jnp.bfloat16)

    # parameters in hidden-on-sublane (column) layout
    w1c = w1.reshape(hidden, 1).astype(jnp.float32)
    b1c = b1.reshape(hidden, 1).astype(jnp.float32)
    w2t = w2.T.astype(mm_dtype)                      # (H, H) MXU operand
    b2c = b2.reshape(hidden, 1).astype(jnp.float32)
    w3r = w3.reshape(1, hidden).astype(mm_dtype)     # (1, H) row for MXU
    b3s = b3.reshape(1, 1).astype(jnp.float32)       # scalar -> SMEM

    if boundary_condition is not None:
        a, b = float(boundary_condition[0]), float(boundary_condition[1])
        bf_scale = 2.0 / (((b - a) * 0.5) ** 2)      # constant multiply, no vdiv
        apply_bc = True
    else:
        a, b, bf_scale, apply_bc = 0.0, 0.0, 0.0, False

    kernel = functools.partial(
        _subtnn_kernel, bc_a=a, bc_b=b, bf_scale=bf_scale,
        apply_bc=apply_bc, tanh_dtype=tanh_dtype)

    grid = (b_pad // tb,)
    full_spec = lambda arr: pl.BlockSpec(arr.shape, lambda i: (0, 0))

    # Only raise the scoped-VMEM limit when the tile actually needs it
    # (v5e default is 16 MiB); at the default TB=8192 this never triggers.
    est_vmem_bytes = (6 * hidden * tb + 16 * tb) * 4
    compiler_kwargs = dict(dimension_semantics=("parallel",))
    if est_vmem_bytes > (12 << 20):
        compiler_kwargs["vmem_limit_bytes"] = min(2 * est_vmem_bytes, 96 << 20)

    out_row = pl.pallas_call(
        kernel,
        out_shape=jax.ShapeDtypeStruct((1, b_pad), jnp.float32),
        grid_spec=pltpu.PrefetchScalarGridSpec(
            num_scalar_prefetch=0,
            grid=grid,
            in_specs=[
                pl.BlockSpec((1, tb), lambda i: (0, i)),   # x tile (lane-dense)
                full_spec(w1c),                            # (H, 1)
                full_spec(b1c),                            # (H, 1)
                full_spec(w2t),                            # (H, H)
                full_spec(b2c),                            # (H, 1)
                full_spec(w3r),                            # (1, H)
                pl.BlockSpec(memory_space=pltpu.MemorySpace.SMEM),  # b3 scalar
            ],
            out_specs=pl.BlockSpec((1, tb), lambda i: (0, i)),
        ),
        compiler_params=pltpu.CompilerParams(**compiler_kwargs),
    )(x_row, w1c, b1c, w2t, b2c, w3r, b3s)

    if lane_dense_output:
        return out_row                               # (1, b_pad), no extra pass
    return out_row[:, :bsz].reshape(bsz, 1)


def init_params(key, hidden=HIDDEN):
    """Deterministic parameter init for the inner 1 -> H -> H -> 1 MLP."""
    k1, k2, k3 = jax.random.split(key, 3)
    w1 = jax.random.normal(k1, (1, hidden), jnp.float32) * 0.5
    b1 = jnp.zeros((1, hidden), jnp.float32)
    w2 = jax.random.normal(k2, (hidden, hidden), jnp.float32) * (1.0 / hidden ** 0.5)
    b2 = jnp.zeros((1, hidden), jnp.float32)
    w3 = jax.random.normal(k3, (1, hidden), jnp.float32) * (1.0 / hidden ** 0.5)
    b3 = jnp.zeros((1, 1), jnp.float32)
    return (w1, b1, w2, b2, w3, b3)


def reference_forward(x, params, boundary_condition):
    """Pure-JAX reference (mirrors the PyTorch module)."""
    w1, b1, w2, b2, w3, b3 = params
    hi = jax.lax.Precision.HIGHEST
    h1 = jnp.tanh(jnp.dot(x, w1, precision=hi) + b1)
    h2 = jnp.tanh(jnp.dot(h1, w2, precision=hi) + b2)
    y = jnp.dot(h2, w3.T, precision=hi) + b3
    if boundary_condition is None:
        return y
    a, b = boundary_condition
    bf = 2.0 * (x - a) * (b - x) / (((b - a) / 2.0) ** 2)
    return bf * y


if __name__ == "__main__":
    key = jax.random.PRNGKey(0)
    kx, kp = jax.random.split(key)

    boundary_condition = (-1.0, 1.0)
    batch = 200                       # exercises padding (200 -> 256) + 2 grid steps
    x = jax.random.uniform(kx, (batch, 1), jnp.float32, minval=-0.95, maxval=0.95)
    params = init_params(kp)

    ref = reference_forward(x, params, boundary_condition)

    # Exact (f32) path — default on v5e, validation path on all chips.
    fwd = jax.jit(functools.partial(subtnn_forward,
                                    boundary_condition=boundary_condition))
    out = jax.block_until_ready(fwd(x, params))
    assert out.shape == (batch, 1)
    max_err = float(jnp.max(jnp.abs(out - ref)))
    assert jnp.allclose(out, ref, atol=2e-5, rtol=2e-5), max_err

    # Fast bf16-EUP path — only exercised on v6e/v7x, with bf16 tolerance.
    if preferred_tanh_dtype() == jnp.bfloat16:
        fwd_fast = jax.jit(functools.partial(subtnn_forward,
                                             boundary_condition=boundary_condition,
                                             tanh_dtype=jnp.bfloat16))
        out_fast = jax.block_until_ready(fwd_fast(x, params))
        assert out_fast.shape == (batch, 1)
        max_err_fast = float(jnp.max(jnp.abs(out_fast - ref)))
        assert max_err_fast < 0.15, max_err_fast

    print("KERNEL_OK")
</pallas_src>

<mosaic_0001>
module attributes {stable_mosaic.version = 11 : i64} {
  func.func @_subtnn_kernel(%arg0: i32, %arg1: memref<1x128xf32, #tpu.memory_space<vmem>>, %arg2: memref<32x1xf32, #tpu.memory_space<vmem>>, %arg3: memref<32x1xf32, #tpu.memory_space<vmem>>, %arg4: memref<32x32xf32, #tpu.memory_space<vmem>>, %arg5: memref<32x1xf32, #tpu.memory_space<vmem>>, %arg6: memref<1x32xf32, #tpu.memory_space<vmem>>, %arg7: memref<1x1xf32, #tpu.memory_space<smem>>, %arg8: memref<1x128xf32, #tpu.memory_space<vmem>>) attributes {dimension_semantics = [#tpu.dimension_semantics<parallel>], iteration_bounds = array<i64: 2>, scalar_prefetch = 0 : i64, scratch_operands = 0 : i64, tpu.core_type = #tpu.core_type<tc>, window_params = [{transform_indices = @transform_0, window_bounds = array<i64: 1, 128>}, {pipeline_mode = #tpu.pipeline_mode<synchronous>, transform_indices = @transform_1, window_bounds = array<i64: 32, 1>}, {pipeline_mode = #tpu.pipeline_mode<synchronous>, transform_indices = @transform_2, window_bounds = array<i64: 32, 1>}, {pipeline_mode = #tpu.pipeline_mode<synchronous>, transform_indices = @transform_3, window_bounds = array<i64: 32, 32>}, {pipeline_mode = #tpu.pipeline_mode<synchronous>, transform_indices = @transform_4, window_bounds = array<i64: 32, 1>}, {pipeline_mode = #tpu.pipeline_mode<synchronous>, transform_indices = @transform_5, window_bounds = array<i64: 1, 32>}, {transform_indices = @transform_6, window_bounds = array<i64: 1, 1>}, {transform_indices = @transform_7, window_bounds = array<i64: 1, 128>}]} {
    %c0 = arith.constant 0 : index
    %c0_0 = arith.constant 0 : index
    %0 = vector.load %arg1[%c0, %c0_0] : memref<1x128xf32, #tpu.memory_space<vmem>>, vector<1x128xf32>
    %c0_1 = arith.constant 0 : index
    %c0_2 = arith.constant 0 : index
    %1 = vector.load %arg2[%c0_1, %c0_2] : memref<32x1xf32, #tpu.memory_space<vmem>>, vector<32x1xf32>
    %2 = vector.broadcast %1 : vector<32x1xf32> to vector<32x128xf32>
    %3 = vector.broadcast %0 : vector<1x128xf32> to vector<32x128xf32>
    %4 = arith.mulf %2, %3 : vector<32x128xf32>
    %c0_3 = arith.constant 0 : index
    %c0_4 = arith.constant 0 : index
    %5 = vector.load %arg3[%c0_3, %c0_4] : memref<32x1xf32, #tpu.memory_space<vmem>>, vector<32x1xf32>
    %6 = vector.broadcast %5 : vector<32x1xf32> to vector<32x128xf32>
    %7 = arith.addf %4, %6 : vector<32x128xf32>
    %8 = math.tanh %7 : vector<32x128xf32>
    %c0_5 = arith.constant 0 : index
    %c0_6 = arith.constant 0 : index
    %9 = vector.load %arg4[%c0_5, %c0_6] : memref<32x32xf32, #tpu.memory_space<vmem>>, vector<32x32xf32>
    %cst = arith.constant dense<0.000000e+00> : vector<32x128xf32>
    %10 = tpu.matmul %9, %8, %cst {dimension_numbers = #tpu.dot_dimension_numbers<[1], [0], [0], [1], [0, 0, 1, 1], [], []>} : vector<32x32xf32>, vector<32x128xf32>, vector<32x128xf32> -> vector<32x128xf32>
    %c0_7 = arith.constant 0 : index
    %c0_8 = arith.constant 0 : index
    %11 = vector.load %arg5[%c0_7, %c0_8] : memref<32x1xf32, #tpu.memory_space<vmem>>, vector<32x1xf32>
    %12 = vector.broadcast %11 : vector<32x1xf32> to vector<32x128xf32>
    %13 = arith.addf %10, %12 : vector<32x128xf32>
    %14 = math.tanh %13 : vector<32x128xf32>
    %c0_9 = arith.constant 0 : index
    %c0_10 = arith.constant 0 : index
    %15 = vector.load %arg6[%c0_9, %c0_10] : memref<1x32xf32, #tpu.memory_space<vmem>>, vector<1x32xf32>
    %cst_11 = arith.constant dense<0.000000e+00> : vector<1x128xf32>
    %16 = tpu.matmul %15, %14, %cst_11 {dimension_numbers = #tpu.dot_dimension_numbers<[1], [0], [0], [1], [0, 0, 1, 1], [], []>} : vector<1x32xf32>, vector<32x128xf32>, vector<1x128xf32> -> vector<1x128xf32>
    %c0_12 = arith.constant 0 : index
    %c0_13 = arith.constant 0 : index
    %17 = memref.load %arg7[%c0_12, %c0_13] : memref<1x1xf32, #tpu.memory_space<smem>>
    %18 = vector.broadcast %17 : f32 to vector<1x128xf32>
    %19 = arith.addf %16, %18 : vector<1x128xf32>
    %cst_14 = arith.constant -1.000000e+00 : f32
    %20 = vector.broadcast %cst_14 : f32 to vector<1x128xf32>
    %21 = arith.subf %0, %20 : vector<1x128xf32>
    %cst_15 = arith.constant 1.000000e+00 : f32
    %22 = vector.broadcast %cst_15 : f32 to vector<1x128xf32>
    %23 = arith.subf %22, %0 : vector<1x128xf32>
    %24 = arith.mulf %21, %23 : vector<1x128xf32>
    %cst_16 = arith.constant 2.000000e+00 : f32
    %25 = vector.broadcast %cst_16 : f32 to vector<1x128xf32>
    %26 = arith.mulf %25, %19 : vector<1x128xf32>
    %27 = arith.mulf %24, %26 : vector<1x128xf32>
    %c0_17 = arith.constant 0 : index
    %c0_18 = arith.constant 0 : index
    %28 = vector.load %arg8[%c0_17, %c0_18] : memref<1x128xf32, #tpu.memory_space<vmem>>, vector<1x128xf32>
    tpu.vector_store %arg8[%c0_17, %c0_18], %27 {strides = array<i32>} : memref<1x128xf32, #tpu.memory_space<vmem>>, vector<1x128xf32>,
    return
  }
  func.func @transform_0(%arg0: i32) -> (i32, i32) {
    %c0_i32 = arith.constant 0 : i32
    %c0_i32_0 = arith.constant 0 : i32
    return %c0_i32, %arg0 : i32, i32
  }
  func.func @transform_1(%arg0: i32) -> (i32, i32) {
    %c0_i32 = arith.constant 0 : i32
    %c0_i32_0 = arith.constant 0 : i32
    %c0_i32_1 = arith.constant 0 : i32
    return %c0_i32, %c0_i32_0 : i32, i32
  }
  func.func @transform_2(%arg0: i32) -> (i32, i32) {
    %c0_i32 = arith.constant 0 : i32
    %c0_i32_0 = arith.constant 0 : i32
    %c0_i32_1 = arith.constant 0 : i32
    return %c0_i32, %c0_i32_0 : i32, i32
  }
  func.func @transform_3(%arg0: i32) -> (i32, i32) {
    %c0_i32 = arith.constant 0 : i32
    %c0_i32_0 = arith.constant 0 : i32
    %c0_i32_1 = arith.constant 0 : i32
    return %c0_i32, %c0_i32_0 : i32, i32
  }
  func.func @transform_4(%arg0: i32) -> (i32, i32) {
    %c0_i32 = arith.constant 0 : i32
    %c0_i32_0 = arith.constant 0 : i32
    %c0_i32_1 = arith.constant 0 : i32
    return %c0_i32, %c0_i32_0 : i32, i32
  }
  func.func @transform_5(%arg0: i32) -> (i32, i32) {
    %c0_i32 = arith.constant 0 : i32
    %c0_i32_0 = arith.constant 0 : i32
    %c0_i32_1 = arith.constant 0 : i32
    return %c0_i32, %c0_i32_0 : i32, i32
  }
  func.func @transform_6(%arg0: i32) -> (i32, i32) {
    %c0_i32 = arith.constant 0 : i32
    %c0_i32_0 = arith.constant 0 : i32
    %c0_i32_1 = arith.constant 0 : i32
    return %c0_i32, %c0_i32_0 : i32, i32
  }
  func.func @transform_7(%arg0: i32) -> (i32, i32) {
    %c0_i32 = arith.constant 0 : i32
    %c0_i32_0 = arith.constant 0 : i32
    return %c0_i32, %arg0 : i32, i32
  }
}

</mosaic_0001>

<llo_original>
// kernel: subtnn_forward.1
$region0: #{subtnn_forward.1}
  #allocation0 [shape = 'u32[]', space=smem, size = 0x4, offset = 0x4, fixed_abs, tag = 'smem constant byte address 0x4 - core index']
  #allocation1 [shape = 'u32[144,128]{1,0:T(1,128)}', space=vmem, size = 0x12000, scoped, tag = 'internal scratch']
  #allocation2 [shape = 'f32[1,1]{1,0:T(1,128)S(6)}', space=smem, size = 0x200, scoped, tag = 'scoped memory for subtnn_forward.1']
  %s0 = inlined_call_operand.vmem [shape: f32[1,256], index: 0, kind: input, shape index: {}]
  %s1 = inlined_call_operand.vmem [shape: f32[32,1], index: 1, kind: input, shape index: {}]
  %s2 = inlined_call_operand.vmem [shape: f32[32,1], index: 2, kind: input, shape index: {}]
  %s3 = inlined_call_operand.vmem [shape: f32[32,32], index: 3, kind: input, shape index: {}]
  %s4 = inlined_call_operand.vmem [shape: f32[32,1], index: 4, kind: input, shape index: {}]
  %s5 = inlined_call_operand.vmem [shape: f32[1,32], index: 5, kind: input, shape index: {}]
  %s6 = inlined_call_operand.<no memory space> [shape: f32[1,1], index: 6, kind: input, shape index: {}]
  %s7 = inlined_call_operand.vmem [shape: f32[1,256], index: 7, kind: output, shape index: {}]
  %s8 = sld [smem:[#allocation0]]
  $region61: #{subtnn_forward.1} parent=0
    _
  %s10 = ssub.s32 1, %s8
  %s11 = scalar_select 0, %s10, %s8
  %12 = sst [smem:[#allocation2]] %s6
  loop: start=0, step=1, limit=4
  $region2: #{subtnn_forward.1} parent=0 // loop_pre_header
    _
  $region3: #{subtnn_forward.1} parent=0 // loop_header
    %s14 = sphi 0, %s18
    %p15 = scmp.ge.s32.totalorder %s14, 4
    %s24 = sphi 0, %s26
    %s27 = sphi 0, %s24
    %s28 = sphi 0, %s27
    %s44 = sphi 0, %s28
    %s48 = sphi 0, %s48
    %s50 = sphi 0, %s48
    %s51 = sphi 0, %s50
    %s65 = sphi 0, %s51
    %s69 = sphi 0, %s69
    %s71 = sphi 0, %s69
    %s72 = sphi 0, %s71
    %s86 = sphi 0, %s72
    %s90 = sphi 0, %s90
    %s92 = sphi 0, %s90
    %s93 = sphi 0, %s92
    %s107 = sphi 0, %s93
    %s111 = sphi 0, %s111
    %s113 = sphi 0, %s111
    %s114 = sphi 0, %s113
    %s128 = sphi 0, %s114
    %s132 = sphi 0, %s132
    %s134 = sphi 0, %s132
    %s135 = sphi 0, %s134
    %s149 = sphi 0, %s135
    %s153 = sphi 0, %s153
    %s155 = sphi 0, %s153
    %s156 = sphi 0, %s155
    %s170 = sphi 0, %s156
    %s176 = sphi 0, %s178
    %s179 = sphi 0, %s176
    %s180 = sphi 0, %s179
    %s196 = sphi 0, %s180
  $region4: #{subtnn_forward.1} parent=0 // loop_header_branch
    %17 = sbr.rel (%p15) target = $region8
  $region5: #{subtnn_forward.1} parent=0 // loop_body
    %s19 = ssub.s32 %s14, 1
    %s20 = ssub.s32 %s14, 2
    %s21 = sadd.s32 %s14, 1
    %s22 = ssub.s32 %s14, %s21
    %p23 = scmp.eq.s32.totalorder %s22, 0
    %s25 = sadd.s32 %s24, 1
    %s26 = scalar_select %p23, %s24, %s25
    %p29 = pneg %p23
    %p30 = scmp.eq.s32.totalorder %s14, 1
    %p31 = por %p29, %p30
    %p32 = scmp.ne.s32.totalorder %s24, %s27
    %p33 = scmp.eq.s32.totalorder %s14, 0
    %p34 = por %p32, %p33
    %p35 = scmp.ne.s32.totalorder %s24, %s27
    %p36 = scmp.eq.s32.totalorder %s19, 1
    %p37 = por %p35, %p36
    %p38 = scmp.ne.s32.totalorder %s27, %s28
    %p39 = scmp.eq.s32.totalorder %s19, 0
    %p40 = por %p38, %p39
    %p41 = scmp.ne.s32.totalorder %s27, %s28
    %p42 = scmp.eq.s32.totalorder %s20, 1
    %p43 = por %p41, %p42
    %p45 = scmp.ne.s32.totalorder %s28, %s44
    %p46 = scmp.eq.s32.totalorder %s20, 0
    %p47 = por %p45, %p46
    %s49 = sadd.s32 %s48, 1
    %p52 = scmp.eq.s32.totalorder %s14, 1
    %p53 = scmp.ne.s32.totalorder %s48, %s50
    %p54 = scmp.eq.s32.totalorder %s14, 0
    %p55 = por %p53, %p54
    %p56 = scmp.ne.s32.totalorder %s48, %s50
    %p57 = scmp.eq.s32.totalorder %s19, 1
    %p58 = por %p56, %p57
    %p59 = scmp.ne.s32.totalorder %s50, %s51
    %p60 = scmp.eq.s32.totalorder %s19, 0
    %p61 = por %p59, %p60
    %p62 = scmp.ne.s32.totalorder %s50, %s51
    %p63 = scmp.eq.s32.totalorder %s20, 1
    %p64 = por %p62, %p63
    %p66 = scmp.ne.s32.totalorder %s51, %s65
    %p67 = scmp.eq.s32.totalorder %s20, 0
    %p68 = por %p66, %p67
    %s70 = sadd.s32 %s69, 1
    %p73 = scmp.eq.s32.totalorder %s14, 1
    %p74 = scmp.ne.s32.totalorder %s69, %s71
    %p75 = scmp.eq.s32.totalorder %s14, 0
    %p76 = por %p74, %p75
    %p77 = scmp.ne.s32.totalorder %s69, %s71
    %p78 = scmp.eq.s32.totalorder %s19, 1
    %p79 = por %p77, %p78
    %p80 = scmp.ne.s32.totalorder %s71, %s72
    %p81 = scmp.eq.s32.totalorder %s19, 0
    %p82 = por %p80, %p81
    %p83 = scmp.ne.s32.totalorder %s71, %s72
    %p84 = scmp.eq.s32.totalorder %s20, 1
    %p85 = por %p83, %p84
    %p87 = scmp.ne.s32.totalorder %s72, %s86
    %p88 = scmp.eq.s32.totalorder %s20, 0
    %p89 = por %p87, %p88
    %s91 = sadd.s32 %s90, 1
    %p94 = scmp.eq.s32.totalorder %s14, 1
    %p95 = scmp.ne.s32.totalorder %s90, %s92
    %p96 = scmp.eq.s32.totalorder %s14, 0
    %p97 = por %p95, %p96
    %p98 = scmp.ne.s32.totalorder %s90, %s92
    %p99 = scmp.eq.s32.totalorder %s19, 1
    %p100 = por %p98, %p99
    %p101 = scmp.ne.s32.totalorder %s92, %s93
    %p102 = scmp.eq.s32.totalorder %s19, 0
    %p103 = por %p101, %p102
    %p104 = scmp.ne.s32.totalorder %s92, %s93
    %p105 = scmp.eq.s32.totalorder %s20, 1
    %p106 = por %p104, %p105
    %p108 = scmp.ne.s32.totalorder %s93, %s107
    %p109 = scmp.eq.s32.totalorder %s20, 0
    %p110 = por %p108, %p109
    %s112 = sadd.s32 %s111, 1
    %p115 = scmp.eq.s32.totalorder %s14, 1
    %p116 = scmp.ne.s32.totalorder %s111, %s113
    %p117 = scmp.eq.s32.totalorder %s14, 0
    %p118 = por %p116, %p117
    %p119 = scmp.ne.s32.totalorder %s111, %s113
    %p120 = scmp.eq.s32.totalorder %s19, 1
    %p121 = por %p119, %p120
    %p122 = scmp.ne.s32.totalorder %s113, %s114
    %p123 = scmp.eq.s32.totalorder %s19, 0
    %p124 = por %p122, %p123
    %p125 = scmp.ne.s32.totalorder %s113, %s114
    %p126 = scmp.eq.s32.totalorder %s20, 1
    %p127 = por %p125, %p126
    %p129 = scmp.ne.s32.totalorder %s114, %s128
    %p130 = scmp.eq.s32.totalorder %s20, 0
    %p131 = por %p129, %p130
    %s133 = sadd.s32 %s132, 1
    %p136 = scmp.eq.s32.totalorder %s14, 1
    %p137 = scmp.ne.s32.totalorder %s132, %s134
    %p138 = scmp.eq.s32.totalorder %s14, 0
    %p139 = por %p137, %p138
    %p140 = scmp.ne.s32.totalorder %s132, %s134
    %p141 = scmp.eq.s32.totalorder %s19, 1
    %p142 = por %p140, %p141
    %p143 = scmp.ne.s32.totalorder %s134, %s135
    %p144 = scmp.eq.s32.totalorder %s19, 0
    %p145 = por %p143, %p144
    %p146 = scmp.ne.s32.totalorder %s134, %s135
    %p147 = scmp.eq.s32.totalorder %s20, 1
    %p148 = por %p146, %p147
    %p150 = scmp.ne.s32.totalorder %s135, %s149
    %p151 = scmp.eq.s32.totalorder %s20, 0
    %p152 = por %p150, %p151
    %s154 = sadd.s32 %s153, 1
    %p157 = scmp.eq.s32.totalorder %s14, 1
    %p158 = scmp.ne.s32.totalorder %s153, %s155
    %p159 = scmp.eq.s32.totalorder %s14, 0
    %p160 = por %p158, %p159
    %p161 = scmp.ne.s32.totalorder %s153, %s155
    %p162 = scmp.eq.s32.totalorder %s19, 1
    %p163 = por %p161, %p162
    %p164 = scmp.ne.s32.totalorder %s155, %s156
    %p165 = scmp.eq.s32.totalorder %s19, 0
    %p166 = por %p164, %p165
    %p167 = scmp.ne.s32.totalorder %s155, %s156
    %p168 = scmp.eq.s32.totalorder %s20, 1
    %p169 = por %p167, %p168
    %p171 = scmp.ne.s32.totalorder %s156, %s170
    %p172 = scmp.eq.s32.totalorder %s20, 0
    %p173 = por %p171, %p172
    %s174 = ssub.s32 %s14, %s21
    %p175 = scmp.eq.s32.totalorder %s174, 0
    %s177 = sadd.s32 %s176, 1
    %s178 = scalar_select %p175, %s176, %s177
    %p181 = pneg %p175
    %p182 = scmp.eq.s32.totalorder %s14, 1
    %p183 = por %p181, %p182
    %p184 = scmp.ne.s32.totalorder %s176, %s179
    %p185 = scmp.eq.s32.totalorder %s14, 0
    %p186 = por %p184, %p185
    %p187 = scmp.ne.s32.totalorder %s176, %s179
    %p188 = scmp.eq.s32.totalorder %s19, 1
    %p189 = por %p187, %p188
    %p190 = scmp.ne.s32.totalorder %s179, %s180
    %p191 = scmp.eq.s32.totalorder %s19, 0
    %p192 = por %p190, %p191
    %p193 = scmp.ne.s32.totalorder %s179, %s180
    %p194 = scmp.eq.s32.totalorder %s20, 1
    %p195 = por %p193, %p194
    %p197 = scmp.ne.s32.totalorder %s180, %s196
    %p198 = scmp.eq.s32.totalorder %s20, 0
    %p199 = por %p197, %p198
    %p200 = scmp.le.s32.totalorder 1, %s14
    %p201 = scmp.lt.s32.totalorder %s14, 3
    %p202 = pnand %p200, %p201
    %p203 = pneg %p202
    // Predicated region
    $region9: #{subtnn_forward.1} parent=5 // pred_check
      _
    $region10: #{subtnn_forward.1} parent=5 // pred_check_branch
      %205 = sbr.rel (%p202) target = $region12
    $region11: #{subtnn_forward.1} parent=5 // pred_region
      %s206 = ssub.s32 %s14, 1
      // Predicated region
      $region13: #{subtnn_forward.1} parent=11 // pred_check
        %p207 = pneg %p61
      $region14: #{subtnn_forward.1} parent=11 // pred_check_branch
        %209 = sbr.rel (%p207) target = $region16
      $region15: #{subtnn_forward.1} parent=11 // pred_region
        _
      $region16: #{subtnn_forward.1} parent=11 // pred_fallthru
        _
      // Predicated region
      $region17: #{subtnn_forward.1} parent=11 // pred_check
        %p210 = pneg %p82
      $region18: #{subtnn_forward.1} parent=11 // pred_check_branch
        %212 = sbr.rel (%p210) target = $region20
      $region19: #{subtnn_forward.1} parent=11 // pred_region
        _
      $region20: #{subtnn_forward.1} parent=11 // pred_fallthru
        _
      // Predicated region
      $region21: #{subtnn_forward.1} parent=11 // pred_check
        %p213 = pneg %p103
      $region22: #{subtnn_forward.1} parent=11 // pred_check_branch
        %215 = sbr.rel (%p213) target = $region24
      $region23: #{subtnn_forward.1} parent=11 // pred_region
        _
      $region24: #{subtnn_forward.1} parent=11 // pred_fallthru
        _
      // Predicated region
      $region25: #{subtnn_forward.1} parent=11 // pred_check
        %p216 = pneg %p124
      $region26: #{subtnn_forward.1} parent=11 // pred_check_branch
        %218 = sbr.rel (%p216) target = $region28
      $region27: #{subtnn_forward.1} parent=11 // pred_region
        _
      $region28: #{subtnn_forward.1} parent=11 // pred_fallthru
        _
      // Predicated region
      $region29: #{subtnn_forward.1} parent=11 // pred_check
        %p219 = pneg %p145
      $region30: #{subtnn_forward.1} parent=11 // pred_check_branch
        %221 = sbr.rel (%p219) target = $region32
      $region31: #{subtnn_forward.1} parent=11 // pred_region
        _
      $region32: #{subtnn_forward.1} parent=11 // pred_fallthru
        _
      // Predicated region
      $region33: #{subtnn_forward.1} parent=11 // pred_check
        %p222 = pneg %p166
      $region34: #{subtnn_forward.1} parent=11 // pred_check_branch
        %224 = sbr.rel (%p222) target = $region36
      $region35: #{subtnn_forward.1} parent=11 // pred_region
        _
      $region36: #{subtnn_forward.1} parent=11 // pred_fallthru
        _
    $region12: #{subtnn_forward.1} parent=5 // pred_fallthru
      _
    %p225 = scmp.lt.s32.totalorder %s14, 2
    // Predicated region
    $region37: #{subtnn_forward.1} parent=5 // pred_check
      %p226 = pneg %p225
    $region38: #{subtnn_forward.1} parent=5 // pred_check_branch
      %228 = sbr.rel (%p226) target = $region40
    $region39: #{subtnn_forward.1} parent=5 // pred_region
      // Predicated region
      $region41: #{subtnn_forward.1} parent=39 // pred_check
        %p229 = pneg %p34
      $region42: #{subtnn_forward.1} parent=39 // pred_check_branch
        %231 = sbr.rel (%p229) target = $region44
      $region43: #{subtnn_forward.1} parent=39 // pred_region
        %p232 = scmp.lt.s32.totalorder %s14, 1
        %s233 = scalar_select %p232, %s14, 1
        %s234 = scalar_lea.vmem %s0, %s233
      $region44: #{subtnn_forward.1} parent=39 // pred_fallthru
        _
    $region40: #{subtnn_forward.1} parent=5 // pred_fallthru
      _
    %p235 = scmp.le.s32.totalorder 1, %s14
    %p236 = scmp.lt.s32.totalorder %s14, 3
    %p237 = pnand %p235, %p236
    %p238 = pneg %p237
    // Predicated region
    $region45: #{subtnn_forward.1} parent=5 // pred_check
      _
    $region46: #{subtnn_forward.1} parent=5 // pred_check_branch
      %240 = sbr.rel (%p237) target = $region48
    $region47: #{subtnn_forward.1} parent=5 // pred_region
      %s241 = ssub.s32 %s14, 1
      %p242 = scmp.lt.s32.totalorder %s19, 1
      %s243 = scalar_select %p242, %s19, 1
      %s244 = scalar_lea.vmem %s0, %s243
      %p245 = pneg %p40
      %p246 = pneg %p37
      %p247 = pneg %p61
      %p248 = pneg %p58
      %p249 = pneg %p82
      %p250 = pneg %p79
      %p251 = pneg %p103
      %p252 = pneg %p100
      %p253 = pneg %p124
      %p254 = pneg %p121
      %p255 = pneg %p145
      %p256 = pneg %p142
      %p257 = pneg %p166
      %p258 = pneg %p163
      %p259 = pneg %p192
      %p260 = pneg %p189
      %p261 = scmp.lt.s32.totalorder %s19, 1
      %s262 = scalar_select %p261, %s19, 1
      %s263 = scalar_lea.vmem %s7, %s262
      %p264 = scmp.lt.s32.totalorder %s19, 1
      %s265 = scalar_select %p264, %s19, 1
      %s266 = scalar_lea.vmem %s0, %s265
      %p267 = scmp.lt.s32.totalorder %s19, 1
      %s268 = scalar_select %p267, %s19, 1
      %s269 = scalar_lea.vmem %s7, %s268
      %v270 = vld [vmem:[%s266] sm:$0x1]
      %v271 = vld [vmem:[%s1] sm:$0xff]
      %v272 = vld [vmem:[%s1 + $0x8] sm:$0xff]
      %v273 = vld [vmem:[%s1 + $0x10] sm:$0xff]
      %v274 = vld [vmem:[%s1 + $0x18] sm:$0xff]
      %276 = vset.pattern.permute.xlu0 0
      %277 = vperm.xlu0 %276, %v271
      %v278 = vpop.permute.xlu0 %277
      %281 = vset.pattern.permute.xlu0 0
      %282 = vperm.xlu0 %281, %v272
      %v283 = vpop.permute.xlu0 %282
      %286 = vset.pattern.permute.xlu0 0
      %287 = vperm.xlu0 %286, %v273
      %v288 = vpop.permute.xlu0 %287
      %291 = vset.pattern.permute.xlu0 0
      %292 = vperm.xlu0 %291, %v274
      %v293 = vpop.permute.xlu0 %292
      %v296 = vlaneseq
      %v297 = vshrl.u32 %v296, 7
      %v298 = vsub.s32 0, %v297
      %v299 = vrot.slane %v270, %v298
      %v301 = vmul.f32 %v278, %v299
      %v302 = vmul.f32 %v283, %v299
      %v303 = vmul.f32 %v288, %v299
      %v304 = vmul.f32 %v293, %v299
      %v305 = vld [vmem:[%s2] sm:$0xff]
      %v306 = vld [vmem:[%s2 + $0x8] sm:$0xff]
      %v307 = vld [vmem:[%s2 + $0x10] sm:$0xff]
      %v308 = vld [vmem:[%s2 + $0x18] sm:$0xff]
      %310 = vset.pattern.permute.xlu0 0
      %311 = vperm.xlu0 %310, %v305
      %v312 = vpop.permute.xlu0 %311
      %315 = vset.pattern.permute.xlu0 0
      %316 = vperm.xlu0 %315, %v306
      %v317 = vpop.permute.xlu0 %316
      %320 = vset.pattern.permute.xlu0 0
      %321 = vperm.xlu0 %320, %v307
      %v322 = vpop.permute.xlu0 %321
      %325 = vset.pattern.permute.xlu0 0
      %326 = vperm.xlu0 %325, %v308
      %v327 = vpop.permute.xlu0 %326
      %v329 = vadd.f32 %v301, %v312
      %v330 = vadd.f32 %v302, %v317
      %v331 = vadd.f32 %v303, %v322
      %v332 = vadd.f32 %v304, %v327
      %v333 = vtanh.pop %v329
      %v334 = vtanh.pop %v330
      %v335 = vtanh.pop %v331
      %v336 = vtanh.pop %v332
      %v337 = vld [vmem:[%s3] sm:$0xff]
      %v338 = vld [vmem:[%s3 + $0x8] sm:$0xff]
      %v339 = vld [vmem:[%s3 + $0x10] sm:$0xff]
      %v340 = vld [vmem:[%s3 + $0x18] sm:$0xff]
      %v341 = vld [vmem:[%s4] sm:$0xff]
      %v342 = vld [vmem:[%s4 + $0x8] sm:$0xff]
      %v343 = vld [vmem:[%s4 + $0x10] sm:$0xff]
      %v344 = vld [vmem:[%s4 + $0x18] sm:$0xff]
      %346 = vset.pattern.permute.xlu0 0
      %347 = vperm.xlu0 %346, %v341
      %v348 = vpop.permute.xlu0 %347
      %351 = vset.pattern.permute.xlu0 0
      %352 = vperm.xlu0 %351, %v342
      %v353 = vpop.permute.xlu0 %352
      %356 = vset.pattern.permute.xlu0 0
      %357 = vperm.xlu0 %356, %v343
      %v358 = vpop.permute.xlu0 %357
      %361 = vset.pattern.permute.xlu0 0
      %362 = vperm.xlu0 %361, %v344
      %v363 = vpop.permute.xlu0 %362
      %vm365 = vcmask 261120
      %v367 = vsel %vm365, %v337, 0
      %v370 = vsel %vm365, %v338, 0
      %v373 = vsel %vm365, %v339, 0
      %v376 = vsel %vm365, %v340, 0
      %378 = vmatprep.subr.mxu0 0.0
      %379 = vmatpush1.msra.mxu0 %v333
      %380 = vmatprep.subr.mxu0 0.0
      %381 = vmatpush1.msra.mxu0 %v334
      %382 = vmatprep.subr.mxu0 0.0
      %383 = vmatpush1.msra.mxu0 %v335
      %384 = vmatprep.subr.mxu0 0.0
      %385 = vmatpush1.msra.mxu0 %v336
      %386 = vmatprep.subr.mxu0 0.0
      %387 = vmatpush1.msra.mxu0 0.0
      %388 = vmatprep.subr.mxu0 0.0
      %389 = vmatpush1.msra.mxu0 0.0
      %390 = vmatprep.subr.mxu0 0.0
      %391 = vmatpush1.msra.mxu0 0.0
      %392 = vmatprep.subr.mxu0 0.0
      %393 = vmatpush1.msra.mxu0 0.0
      %394 = vmatprep.subr.mxu0 0.0
      %395 = vmatpush1.msra.mxu0 0.0
      %396 = vmatprep.subr.mxu0 0.0
      %397 = vmatpush1.msra.mxu0 0.0
      %398 = vmatprep.subr.mxu0 0.0
      %399 = vmatpush1.msra.mxu0 0.0
      %400 = vmatprep.subr.mxu0 0.0
      %401 = vmatpush1.msra.mxu0 0.0
      %402 = vmatprep.subr.mxu0 0.0
      %403 = vmatpush1.msra.mxu0 0.0
      %404 = vmatprep.subr.mxu0 0.0
      %405 = vmatpush1.msra.mxu0 0.0
      %406 = vmatprep.subr.mxu0 0.0
      %407 = vmatpush1.msra.mxu0 0.0
      %408 = vmatprep.subr.mxu0 0.0
      %409 = vmatpush1.msra.mxu0 0.0
      %410 = vmatprep.subr.mxu0 0.0
      %411 = vmatpush1.msra.mxu0 0.0
      %412 = vmatprep.subr.mxu0 0.0
      %413 = vmatpush1.msra.mxu0 0.0
      %414 = vmatprep.subr.mxu0 0.0
      %415 = vmatpush1.msra.mxu0 0.0
      %416 = vmatprep.subr.mxu0 0.0
      %417 = vmatpush1.msra.mxu0 0.0
      %418 = vmatprep.subr.mxu0 0.0
      %419 = vmatpush1.msra.mxu0 0.0
      %420 = vmatprep.subr.mxu0 0.0
      %421 = vmatpush1.msra.mxu0 0.0
      %422 = vmatprep.subr.mxu0 0.0
      %423 = vmatpush1.msra.mxu0 0.0
      %424 = vmatprep.subr.mxu0 0.0
      %425 = vmatpush1.msra.mxu0 0.0
      %426 = vmatprep.subr.mxu0 0.0
      %427 = vmatpush1.msra.mxu0 0.0
      %428 = vmatprep.subr.mxu0 0.0
      %429 = vmatpush1.msra.mxu0 0.0
      %430 = vmatprep.subr.mxu0 0.0
      %431 = vmatpush1.msra.mxu0 0.0
      %432 = vmatprep.subr.mxu0 0.0
      %433 = vmatpush1.msra.mxu0 0.0
      %434 = vmatprep.subr.mxu0 0.0
      %435 = vmatpush1.msra.mxu0 0.0
      %436 = vmatprep.subr.mxu0 0.0
      %437 = vmatpush1.msra.mxu0 0.0
      %438 = vmatprep.subr.mxu0 0.0
      %439 = vmatpush1.msra.mxu0 0.0
      %440 = vmatprep.subr.mxu0 0.0
      %441 = vmatpush1.msra.mxu0 0.0
      %442 = vmatprep.mubr.f32.mxu0 0.0
      %443 = vmatmul.mubr.f32.gmra.mrb[0].mxu0 %v367
      %v444 = vpop.f32.mrb[0].mxu0
      %v445 = vadd.f32 %v348, %v444
      %v446 = vpop.f32.mrb[0].mxu0
      %447 = vmatprep.mubr.f32.mxu0 0.0
      %448 = vmatmul.mubr.f32.gmra.mrb[0].mxu0 %v370
      %v449 = vpop.f32.mrb[0].mxu0
      %v450 = vadd.f32 %v353, %v449
      %v451 = vpop.f32.mrb[0].mxu0
      %452 = vmatprep.mubr.f32.mxu0 0.0
      %453 = vmatmul.mubr.f32.gmra.mrb[0].mxu0 %v373
      %v454 = vpop.f32.mrb[0].mxu0
      %v455 = vadd.f32 %v358, %v454
      %v456 = vpop.f32.mrb[0].mxu0
      %457 = vmatprep.mubr.f32.mxu0 0.0
      %458 = vmatmul.mubr.f32.gmra.mrb[0].mxu0 %v376
      %v459 = vpop.f32.mrb[0].mxu0
      %v460 = vadd.f32 %v363, %v459
      %v461 = vpop.f32.mrb[0].mxu0
      %462 = vdwg.mxu0
      %v463 = vtanh.pop %v445
      %v464 = vtanh.pop %v450
      %v465 = vtanh.pop %v455
      %v466 = vtanh.pop %v460
      %v467 = vld [vmem:[%s5] sm:$0x1]
      %s468 = sld [smem:[#allocation2]]
      %v469 = vstv %s468
      %v471 = vsel %vm365, %v467, 0
      %473 = vmatprep.subr.mxu0 0.0
      %474 = vmatpush1.msra.mxu0 %v463
      %475 = vmatprep.subr.mxu0 0.0
      %476 = vmatpush1.msra.mxu0 %v464
      %477 = vmatprep.subr.mxu0 0.0
      %478 = vmatpush1.msra.mxu0 %v465
      %479 = vmatprep.subr.mxu0 0.0
      %480 = vmatpush1.msra.mxu0 %v466
      %481 = vmatprep.subr.mxu0 0.0
      %482 = vmatpush1.msra.mxu0 0.0
      %483 = vmatprep.subr.mxu0 0.0
      %484 = vmatpush1.msra.mxu0 0.0
      %485 = vmatprep.subr.mxu0 0.0
      %486 = vmatpush1.msra.mxu0 0.0
      %487 = vmatprep.subr.mxu0 0.0
      %488 = vmatpush1.msra.mxu0 0.0
      %489 = vmatprep.subr.mxu0 0.0
      %490 = vmatpush1.msra.mxu0 0.0
      %491 = vmatprep.subr.mxu0 0.0
      %492 = vmatpush1.msra.mxu0 0.0
      %493 = vmatprep.subr.mxu0 0.0
      %494 = vmatpush1.msra.mxu0 0.0
      %495 = vmatprep.subr.mxu0 0.0
      %496 = vmatpush1.msra.mxu0 0.0
      %497 = vmatprep.subr.mxu0 0.0
      %498 = vmatpush1.msra.mxu0 0.0
      %499 = vmatprep.subr.mxu0 0.0
      %500 = vmatpush1.msra.mxu0 0.0
      %501 = vmatprep.subr.mxu0 0.0
      %502 = vmatpush1.msra.mxu0 0.0
      %503 = vmatprep.subr.mxu0 0.0
      %504 = vmatpush1.msra.mxu0 0.0
      %505 = vmatprep.subr.mxu0 0.0
      %506 = vmatpush1.msra.mxu0 0.0
      %507 = vmatprep.subr.mxu0 0.0
      %508 = vmatpush1.msra.mxu0 0.0
      %509 = vmatprep.subr.mxu0 0.0
      %510 = vmatpush1.msra.mxu0 0.0
      %511 = vmatprep.subr.mxu0 0.0
      %512 = vmatpush1.msra.mxu0 0.0
      %513 = vmatprep.subr.mxu0 0.0
      %514 = vmatpush1.msra.mxu0 0.0
      %515 = vmatprep.subr.mxu0 0.0
      %516 = vmatpush1.msra.mxu0 0.0
      %517 = vmatprep.subr.mxu0 0.0
      %518 = vmatpush1.msra.mxu0 0.0
      %519 = vmatprep.subr.mxu0 0.0
      %520 = vmatpush1.msra.mxu0 0.0
      %521 = vmatprep.subr.mxu0 0.0
      %522 = vmatpush1.msra.mxu0 0.0
      %523 = vmatprep.subr.mxu0 0.0
      %524 = vmatpush1.msra.mxu0 0.0
      %525 = vmatprep.subr.mxu0 0.0
      %526 = vmatpush1.msra.mxu0 0.0
      %527 = vmatprep.subr.mxu0 0.0
      %528 = vmatpush1.msra.mxu0 0.0
      %529 = vmatprep.subr.mxu0 0.0
      %530 = vmatpush1.msra.mxu0 0.0
      %531 = vmatprep.subr.mxu0 0.0
      %532 = vmatpush1.msra.mxu0 0.0
      %533 = vmatprep.subr.mxu0 0.0
      %534 = vmatpush1.msra.mxu0 0.0
      %535 = vmatprep.subr.mxu0 0.0
      %536 = vmatpush1.msra.mxu0 0.0
      %537 = vmatprep.mubr.f32.mxu0 0.0
      %538 = vmatmul.mubr.f32.gmra.mrb[0].mxu0 %v471
      %v539 = vpop.f32.mrb[0].mxu0
      %v540 = vadd.f32 %v469, %v539
      %v541 = vpop.f32.mrb[0].mxu0
      %542 = vdwg.mxu0
      %v543 = vsub.f32 %v270, -1.0
      %v544 = vsub.f32 1.0, %v270
      %v545 = vmul.f32 %v543, %v544
      %v546 = vmul.f32 %v540, 2.0
      %v547 = vmul.f32 %v545, %v546
      %548 = vst [vmem:[%s269] sm:$0x1] %v547
      %p549 = scmp.lt.s32.totalorder %s19, 1
      %s550 = scalar_select %p549, %s19, 1
      %s551 = scalar_lea.vmem %s7, %s550
      // Predicated region
      $region49: #{subtnn_forward.1} parent=47 // pred_check
        %p552 = pneg %p189
      $region50: #{subtnn_forward.1} parent=47 // pred_check_branch
        %554 = sbr.rel (%p552) target = $region52
      $region51: #{subtnn_forward.1} parent=47 // pred_region
        _
      $region52: #{subtnn_forward.1} parent=47 // pred_fallthru
        _
    $region48: #{subtnn_forward.1} parent=5 // pred_fallthru
      _
    %p555 = scmp.le.s32.totalorder 2, %s14
    // Predicated region
    $region53: #{subtnn_forward.1} parent=5 // pred_check
      %p556 = pneg %p555
    $region54: #{subtnn_forward.1} parent=5 // pred_check_branch
      %558 = sbr.rel (%p556) target = $region56
    $region55: #{subtnn_forward.1} parent=5 // pred_region
      %s559 = ssub.s32 %s14, 2
      // Predicated region
      $region57: #{subtnn_forward.1} parent=55 // pred_check
        %p560 = pneg %p195
      $region58: #{subtnn_forward.1} parent=55 // pred_check_branch
        %562 = sbr.rel (%p560) target = $region60
      $region59: #{subtnn_forward.1} parent=55 // pred_region
        %p563 = scmp.lt.s32.totalorder %s20, 1
        %s564 = scalar_select %p563, %s20, 1
        %s565 = scalar_lea.vmem %s7, %s564
      $region60: #{subtnn_forward.1} parent=55 // pred_fallthru
        _
    $region56: #{subtnn_forward.1} parent=5 // pred_fallthru
      _
  $region6: #{subtnn_forward.1} parent=0 // loop_footer
    %s18 = sadd.s32 1, %s14
  $region7: #{subtnn_forward.1} parent=0 // loop_footer_branch
    %13 = sbr.rel target = $region3
  $region8: #{subtnn_forward.1} parent=0 // loop_exit
    _

</llo_original>
